<compile_context>
chip_gen: v7x
topology: tpu7x:2x2x1
jax: 0.10.0
libtpu: 0.0.40
codegen_flags: <defaults>
</compile_context>

<pallas_src>
import functools

import jax
import jax.numpy as jnp
from jax.experimental import pallas as pl
from jax.experimental.pallas import tpu as pltpu


def _round_up(x, m):
    return ((x + m - 1) // m) * m


def _nll_kernel(has_weight, *refs):
    if has_weight:
        pred_ref, tgt_ref, w_ref, num_ref, den_ref, nacc_ref, dacc_ref = refs
    else:
        pred_ref, tgt_ref, num_ref, nacc_ref = refs
        w_ref = den_ref = dacc_ref = None

    i = pl.program_id(1)  # row-tile step within this core's shard

    @pl.when(i == 0)
    def _():
        nacc_ref[...] = jnp.zeros_like(nacc_ref)
        if has_weight:
            dacc_ref[...] = jnp.zeros_like(dacc_ref)

    pred = pred_ref[...].astype(jnp.float32)            # (tn, C), upcast in-kernel
    tgt = tgt_ref[...]                                  # (tn, 1) i32

    # One-hot gather along the class (lane) axis. Padded rows have tgt = -1,
    # so the one-hot is all-zero and they contribute nothing.
    cls_idx = jax.lax.broadcasted_iota(jnp.int32, pred.shape, 1)    # (tn, C)
    onehot = (cls_idx == tgt).astype(jnp.float32)                   # (tn, C)

    picked = jnp.sum(pred * onehot, axis=-1, keepdims=True)         # (tn, 1)

    if has_weight:
        wt = jnp.sum(w_ref[...] * onehot, axis=-1, keepdims=True)   # (tn, 1)
        nacc_ref[...] += -wt * picked
        dacc_ref[...] += wt
    else:
        nacc_ref[...] += -picked

    # Deferred reduction: one cross-sublane reduce + tiny store at the end.
    @pl.when(i == pl.num_programs(1) - 1)
    def _():
        num_ref[...] = jnp.sum(nacc_ref[...], axis=0, keepdims=True)   # (1, 1)
        if has_weight:
            den_ref[...] = jnp.sum(dacc_ref[...], axis=0, keepdims=True)


def unmasked_weighted_nll_loss(pred, target, weight=None, *,
                               max_tn=1024, core_splits=2):
    """Pallas implementation of UnMaskedWeightedNLLLoss.forward."""
    N, C = pred.shape
    has_weight = weight is not None

    # --- tile sizing: biggest row tile that keeps the pred double-buffer
    # under ~24 MiB (safe on v5e/v6e 128 MiB and v7x 64 MiB VMEM), but no
    # larger than the work available per core (limits padding waste).
    itemsize = pred.dtype.itemsize
    lane_c = _round_up(C, 128)                       # VMEM lane padding
    budget = 24 * 1024 * 1024
    tn_cap = max(8, min(max_tn, (budget // (2 * lane_c * itemsize)) // 8 * 8))
    tn_need = _round_up(max(1, -(-N // core_splits)), 8)
    tn = int(min(tn_cap, tn_need))

    N_pad = _round_up(N, tn * core_splits)
    steps_per_core = N_pad // (tn * core_splits)

    tgt = target.astype(jnp.int32)
    if N_pad != N:
        pred = jnp.pad(pred, ((0, N_pad - N), (0, 0)))               # zero rows
        tgt = jnp.pad(tgt, (0, N_pad - N), constant_values=-1)       # masked
    tgt2d = tgt.reshape(N_pad, 1)

    row_map = lambda c, i: (c * steps_per_core + i, 0)

    in_specs = [
        pl.BlockSpec((tn, C), row_map),       # pred tile (native dtype)
        pl.BlockSpec((tn, 1), row_map),       # target tile
    ]
    inputs = [pred, tgt2d]
    if has_weight:
        in_specs.append(pl.BlockSpec((1, C), lambda c, i: (0, 0)))   # resident
        inputs.append(weight.astype(jnp.float32).reshape(1, C))

    # Per-core partial outputs: (core_splits, 1, 1); the block squeezes the
    # leading axis so the last-two-dims layout constraint is satisfied.
    part_spec = pl.BlockSpec((None, 1, 1), lambda c, i: (c, 0, 0))
    part_shape = jax.ShapeDtypeStruct((core_splits, 1, 1), jnp.float32)
    out_shape = (part_shape, part_shape) if has_weight else part_shape
    out_specs = (part_spec, part_spec) if has_weight else part_spec

    scratch = [pltpu.VMEM((tn, 1), jnp.float32)]          # numerator partials
    if has_weight:
        scratch.append(pltpu.VMEM((tn, 1), jnp.float32))  # denominator partials

    result = pl.pallas_call(
        functools.partial(_nll_kernel, has_weight),
        out_shape=out_shape,
        grid_spec=pltpu.PrefetchScalarGridSpec(
            num_scalar_prefetch=0,
            grid=(core_splits, steps_per_core),
            in_specs=in_specs,
            out_specs=out_specs,
            scratch_shapes=scratch,
        ),
        compiler_params=pltpu.CompilerParams(
            dimension_semantics=("parallel", "arbitrary"),
            vmem_limit_bytes=48 * 1024 * 1024,
        ),
    )(*inputs)

    if has_weight:
        num, den = result
        return jnp.sum(num) / jnp.sum(den)
    return jnp.sum(result)


def _reference(pred, target, weight=None):
    picked = pred.astype(jnp.float32)[jnp.arange(pred.shape[0]), target]
    if weight is None:
        return jnp.sum(-picked)
    wt = weight[target]
    return jnp.sum(-wt * picked) / jnp.sum(wt)


if __name__ == "__main__":
    key = jax.random.PRNGKey(0)
    k1, k2 = jax.random.split(key)

    batch, seq_len, n_classes = 2, 8, 32
    N = batch * seq_len                                    # pred: (N, C)

    logits = jax.random.normal(k1, (N, n_classes), jnp.float32)
    pred = jax.nn.log_softmax(logits, axis=-1)             # log-probs
    target = jax.random.randint(k2, (N,), 0, n_classes, jnp.int32)
    weight = jnp.linspace(0.5, 1.5, n_classes, dtype=jnp.float32)

    # weight=None path
    loss_none = unmasked_weighted_nll_loss(pred, target, weight=None)
    jax.block_until_ready(loss_none)
    ref_none = _reference(pred, target, None)
    assert jnp.allclose(loss_none, ref_none, rtol=1e-5, atol=1e-5), (loss_none, ref_none)

    # weighted path
    loss_w = unmasked_weighted_nll_loss(pred, target, weight=weight)
    jax.block_until_ready(loss_w)
    ref_w = _reference(pred, target, weight)
    assert jnp.allclose(loss_w, ref_w, rtol=1e-5, atol=1e-5), (loss_w, ref_w)

    # non-multiple N -> exercises the padding + masking path
    N_odd = 13
    loss_odd = unmasked_weighted_nll_loss(pred[:N_odd], target[:N_odd], weight=weight)
    jax.block_until_ready(loss_odd)
    ref_odd = _reference(pred[:N_odd], target[:N_odd], weight)
    assert jnp.allclose(loss_odd, ref_odd, rtol=1e-5, atol=1e-5), (loss_odd, ref_odd)

    # native bf16 input path (no wrapper-side f32 cast; upcast happens in-kernel)
    pred_bf16 = pred.astype(jnp.bfloat16)
    loss_bf16 = unmasked_weighted_nll_loss(pred_bf16, target, weight=weight)
    jax.block_until_ready(loss_bf16)
    ref_bf16 = _reference(pred_bf16, target, weight)
    assert jnp.allclose(loss_bf16, ref_bf16, rtol=2e-3, atol=2e-3), (loss_bf16, ref_bf16)

    print("KERNEL_OK")
</pallas_src>

<mosaic_0001>
module attributes {stable_mosaic.version = 11 : i64} {
  func.func @_nll_kernel(%arg0: i32, %arg1: i32, %arg2: memref<8x32xf32, #tpu.memory_space<vmem>>, %arg3: memref<8x1xi32, #tpu.memory_space<vmem>>, %arg4: memref<1x1x1xf32, #tpu.memory_space<vmem>>, %arg5: memref<8x1xf32, #tpu.memory_space<vmem>>) attributes {dimension_semantics = [#tpu.dimension_semantics<parallel>, #tpu.dimension_semantics<arbitrary>], iteration_bounds = array<i64: 2, 1>, scalar_prefetch = 0 : i64, scratch_operands = 1 : i64, tpu.core_type = #tpu.core_type<tc>, window_params = [{transform_indices = @transform_0, window_bounds = array<i64: 8, 32>}, {transform_indices = @transform_1, window_bounds = array<i64: 8, 1>}, {transform_indices = @transform_2, window_bounds = array<i64: 1, 1, 1>}]} {
    %c0_i32 = arith.constant 0 : i32
    %0 = arith.cmpi eq, %arg1, %c0_i32 : i32
    %1 = arith.extui %0 : i1 to i32
    %c0_i32_0 = arith.constant 0 : i32
    %2 = arith.cmpi ne, %1, %c0_i32_0 : i32
    scf.if %2 {
      %cst_11 = arith.constant 0.000000e+00 : f32
      %21 = vector.broadcast %cst_11 : f32 to vector<8x1xf32>
      %c0_12 = arith.constant 0 : index
      %c0_13 = arith.constant 0 : index
      %22 = vector.load %arg5[%c0_12, %c0_13] : memref<8x1xf32, #tpu.memory_space<vmem>>, vector<8x1xf32>
      tpu.vector_store %arg5[%c0_12, %c0_13], %21 {strides = array<i32>} : memref<8x1xf32, #tpu.memory_space<vmem>>, vector<8x1xf32>,
    } else {
    }
    %c0 = arith.constant 0 : index
    %c0_1 = arith.constant 0 : index
    %3 = vector.load %arg2[%c0, %c0_1] : memref<8x32xf32, #tpu.memory_space<vmem>>, vector<8x32xf32>
    %c0_2 = arith.constant 0 : index
    %c0_3 = arith.constant 0 : index
    %4 = vector.load %arg3[%c0_2, %c0_3] : memref<8x1xi32, #tpu.memory_space<vmem>>, vector<8x1xi32>
    %5 = tpu.iota {dimensions = array<i32: 1>} : vector<8x32xi32>
    %6 = vector.broadcast %4 : vector<8x1xi32> to vector<8x32xi32>
    %7 = arith.cmpi eq, %5, %6 : vector<8x32xi32>
    %8 = arith.extui %7 : vector<8x32xi1> to vector<8x32xi32>
    %9 = arith.sitofp %8 : vector<8x32xi32> to vector<8x32xf32>
    %10 = arith.mulf %3, %9 : vector<8x32xf32>
    %cst = arith.constant dense<0.000000e+00> : vector<8xf32>
    %11 = vector.multi_reduction <add>, %10, %cst [1] : vector<8x32xf32> to vector<8xf32>
    %12 = vector.shape_cast %11 : vector<8xf32> to vector<8x1xf32>
    %c0_4 = arith.constant 0 : index
    %c0_5 = arith.constant 0 : index
    %13 = vector.load %arg5[%c0_4, %c0_5] : memref<8x1xf32, #tpu.memory_space<vmem>>, vector<8x1xf32>
    %cst_6 = arith.constant 0.000000e+00 : f32
    %14 = vector.broadcast %cst_6 : f32 to vector<8x1xf32>
    %15 = arith.subf %14, %12 : vector<8x1xf32>
    %16 = arith.addf %13, %15 : vector<8x1xf32>
    %c0_7 = arith.constant 0 : index
    %c0_8 = arith.constant 0 : index
    %17 = vector.load %arg5[%c0_7, %c0_8] : memref<8x1xf32, #tpu.memory_space<vmem>>, vector<8x1xf32>
    tpu.vector_store %arg5[%c0_7, %c0_8], %16 {strides = array<i32>} : memref<8x1xf32, #tpu.memory_space<vmem>>, vector<8x1xf32>,
    %c0_i32_9 = arith.constant 0 : i32
    %18 = arith.cmpi eq, %arg1, %c0_i32_9 : i32
    %19 = arith.extui %18 : i1 to i32
    %c0_i32_10 = arith.constant 0 : i32
    %20 = arith.cmpi ne, %19, %c0_i32_10 : i32
    scf.if %20 {
      %c0_11 = arith.constant 0 : index
      %c0_12 = arith.constant 0 : index
      %21 = vector.load %arg5[%c0_11, %c0_12] : memref<8x1xf32, #tpu.memory_space<vmem>>, vector<8x1xf32>
      %cst_13 = arith.constant dense<0.000000e+00> : vector<1xf32>
      %22 = vector.multi_reduction <add>, %21, %cst_13 [0] : vector<8x1xf32> to vector<1xf32>
      %23 = vector.shape_cast %22 : vector<1xf32> to vector<1x1xf32>
      %c0_14 = arith.constant 0 : index
      %c0_15 = arith.constant 0 : index
      %c0_16 = arith.constant 0 : index
      %24 = vector.load %arg4[%c0_14, %c0_15, %c0_16] : memref<1x1x1xf32, #tpu.memory_space<vmem>>, vector<1x1x1xf32>
      %25 = vector.shape_cast %24 : vector<1x1x1xf32> to vector<1x1xf32>
      %26 = vector.shape_cast %23 : vector<1x1xf32> to vector<1x1x1xf32>
      tpu.vector_store %arg4[%c0_14, %c0_15, %c0_16], %26 {strides = array<i32>} : memref<1x1x1xf32, #tpu.memory_space<vmem>>, vector<1x1x1xf32>,
    } else {
    }
    return
  }
  func.func @transform_0(%arg0: i32, %arg1: i32) -> (i32, i32) {
    %c1_i32 = arith.constant 1 : i32
    %0 = arith.muli %arg0, %c1_i32 : i32
    %1 = arith.addi %0, %arg1 : i32
    %c0_i32 = arith.constant 0 : i32
    %c0_i32_0 = arith.constant 0 : i32
    return %1, %c0_i32 : i32, i32
  }
  func.func @transform_1(%arg0: i32, %arg1: i32) -> (i32, i32) {
    %c1_i32 = arith.constant 1 : i32
    %0 = arith.muli %arg0, %c1_i32 : i32
    %1 = arith.addi %0, %arg1 : i32
    %c0_i32 = arith.constant 0 : i32
    %c0_i32_0 = arith.constant 0 : i32
    return %1, %c0_i32 : i32, i32
  }
  func.func @transform_2(%arg0: i32, %arg1: i32) -> (i32, i32, i32) {
    %c0_i32 = arith.constant 0 : i32
    %c0_i32_0 = arith.constant 0 : i32
    %c0_i32_1 = arith.constant 0 : i32
    return %arg0, %c0_i32, %c0_i32_0 : i32, i32, i32
  }
}

</mosaic_0001>

<llo_original>
// kernel: tpu_custom_call.1
$region0: #{tpu_custom_call.1}
  #allocation0 [shape = 'u32[]', space=smem, size = 0x4, offset = 0x4, fixed_abs, tag = 'smem constant byte address 0x4 - core index']
  #allocation1 [shape = 'u32[144,128]{1,0:T(1,128)}', space=vmem, size = 0x12000, scoped, tag = 'internal scratch']
  #allocation2 [shape = 'f32[8,1]{1,0:T(8,128)}', space=vmem, size = 0x1000, scoped, tag = 'scratch operand']
  %s0 = inlined_call_operand.vmem [shape: f32[16,32], index: 0, kind: input, shape index: {}]
  %s1 = inlined_call_operand.vmem [shape: s32[16,1], index: 1, kind: input, shape index: {}]
  %s2 = inlined_call_operand.vmem [shape: f32[2,1,1], index: 2, kind: output, shape index: {}]
  %s3 = sld [smem:[#allocation0]]
  $region49: #{tpu_custom_call.1} parent=0
    _
  %s5 = ssub.s32 1, %s3
  %s6 = scalar_select 0, %s5, %s3
  loop: start=0, step=1, limit=4
  $region2: #{tpu_custom_call.1} parent=0 // loop_pre_header
    _
  $region3: #{tpu_custom_call.1} parent=0 // loop_header
    %s8 = sphi 0, %s12
    %p9 = scmp.ge.s32.totalorder %s8, 4
    %s15 = sphi 0, %s27
    %s16 = sphi 0, %s23
    %s17 = sphi 0, %s15
    %s18 = sphi 0, %s16
    %s19 = sphi 0, %s17
    %s20 = sphi 0, %s18
    %s32 = sphi 0, %s34
    %s35 = sphi 0, %s32
    %s36 = sphi 0, %s35
    %s52 = sphi 0, %s36
    %s60 = sphi 0, %s62
    %s63 = sphi 0, %s60
    %s64 = sphi 0, %s63
    %s80 = sphi 0, %s64
    %s86 = sphi 0, %s88
    %s89 = sphi 0, %s86
    %s90 = sphi 0, %s89
    %s106 = sphi 0, %s90
  $region4: #{tpu_custom_call.1} parent=0 // loop_header_branch
    %11 = sbr.rel (%p9) target = $region8
  $region5: #{tpu_custom_call.1} parent=0 // loop_body
    %s13 = ssub.s32 %s8, 1
    %s14 = ssub.s32 %s8, 2
    %s21 = sadd.s32 1, %s16
    %p22 = scmp.ge.s32.totalorder %s21, 1
    %s23 = scalar_select %p22, 0, %s21
    %s24 = sadd.s32 1, %s15
    %s25 = scalar_select %p22, %s24, %s15
    %p26 = scmp.ge.s32.totalorder %s25, 2
    %s27 = scalar_select %p26, 0, %s25
    %s28 = sadd.s32 %s15, %s16
    %s29 = sadd.s32 %s27, %s23
    %s30 = ssub.s32 %s28, %s29
    %p31 = scmp.eq.s32.totalorder %s30, 0
    %s33 = sadd.s32 %s32, 1
    %s34 = scalar_select %p31, %s32, %s33
    %p37 = pneg %p31
    %p38 = scmp.eq.s32.totalorder %s8, 1
    %p39 = por %p37, %p38
    %p40 = scmp.ne.s32.totalorder %s32, %s35
    %p41 = scmp.eq.s32.totalorder %s8, 0
    %p42 = por %p40, %p41
    %p43 = scmp.ne.s32.totalorder %s32, %s35
    %p44 = scmp.eq.s32.totalorder %s13, 1
    %p45 = por %p43, %p44
    %p46 = scmp.ne.s32.totalorder %s35, %s36
    %p47 = scmp.eq.s32.totalorder %s13, 0
    %p48 = por %p46, %p47
    %p49 = scmp.ne.s32.totalorder %s35, %s36
    %p50 = scmp.eq.s32.totalorder %s14, 1
    %p51 = por %p49, %p50
    %p53 = scmp.ne.s32.totalorder %s36, %s52
    %p54 = scmp.eq.s32.totalorder %s14, 0
    %p55 = por %p53, %p54
    %s56 = sadd.s32 %s15, %s16
    %s57 = sadd.s32 %s27, %s23
    %s58 = ssub.s32 %s56, %s57
    %p59 = scmp.eq.s32.totalorder %s58, 0
    %s61 = sadd.s32 %s60, 1
    %s62 = scalar_select %p59, %s60, %s61
    %p65 = pneg %p59
    %p66 = scmp.eq.s32.totalorder %s8, 1
    %p67 = por %p65, %p66
    %p68 = scmp.ne.s32.totalorder %s60, %s63
    %p69 = scmp.eq.s32.totalorder %s8, 0
    %p70 = por %p68, %p69
    %p71 = scmp.ne.s32.totalorder %s60, %s63
    %p72 = scmp.eq.s32.totalorder %s13, 1
    %p73 = por %p71, %p72
    %p74 = scmp.ne.s32.totalorder %s63, %s64
    %p75 = scmp.eq.s32.totalorder %s13, 0
    %p76 = por %p74, %p75
    %p77 = scmp.ne.s32.totalorder %s63, %s64
    %p78 = scmp.eq.s32.totalorder %s14, 1
    %p79 = por %p77, %p78
    %p81 = scmp.ne.s32.totalorder %s64, %s80
    %p82 = scmp.eq.s32.totalorder %s14, 0
    %p83 = por %p81, %p82
    %s84 = ssub.s32 %s15, %s27
    %p85 = scmp.eq.s32.totalorder %s84, 0
    %s87 = sadd.s32 %s86, 1
    %s88 = scalar_select %p85, %s86, %s87
    %p91 = pneg %p85
    %p92 = scmp.eq.s32.totalorder %s8, 1
    %p93 = por %p91, %p92
    %p94 = scmp.ne.s32.totalorder %s86, %s89
    %p95 = scmp.eq.s32.totalorder %s8, 0
    %p96 = por %p94, %p95
    %p97 = scmp.ne.s32.totalorder %s86, %s89
    %p98 = scmp.eq.s32.totalorder %s13, 1
    %p99 = por %p97, %p98
    %p100 = scmp.ne.s32.totalorder %s89, %s90
    %p101 = scmp.eq.s32.totalorder %s13, 0
    %p102 = por %p100, %p101
    %p103 = scmp.ne.s32.totalorder %s89, %s90
    %p104 = scmp.eq.s32.totalorder %s14, 1
    %p105 = por %p103, %p104
    %p107 = scmp.ne.s32.totalorder %s90, %s106
    %p108 = scmp.eq.s32.totalorder %s14, 0
    %p109 = por %p107, %p108
    %p110 = scmp.le.s32.totalorder 1, %s8
    %p111 = scmp.lt.s32.totalorder %s8, 3
    %p112 = pnand %p110, %p111
    %p113 = pneg %p112
    // Predicated region
    $region9: #{tpu_custom_call.1} parent=5 // pred_check
      _
    $region10: #{tpu_custom_call.1} parent=5 // pred_check_branch
      %115 = sbr.rel (%p112) target = $region12
    $region11: #{tpu_custom_call.1} parent=5 // pred_region
      %s116 = ssub.s32 %s8, 1
    $region12: #{tpu_custom_call.1} parent=5 // pred_fallthru
      _
    %p117 = scmp.lt.s32.totalorder %s8, 2
    // Predicated region
    $region13: #{tpu_custom_call.1} parent=5 // pred_check
      %p118 = pneg %p117
    $region14: #{tpu_custom_call.1} parent=5 // pred_check_branch
      %120 = sbr.rel (%p118) target = $region16
    $region15: #{tpu_custom_call.1} parent=5 // pred_region
      // Predicated region
      $region17: #{tpu_custom_call.1} parent=15 // pred_check
        %p121 = pneg %p42
      $region18: #{tpu_custom_call.1} parent=15 // pred_check_branch
        %123 = sbr.rel (%p121) target = $region20
      $region19: #{tpu_custom_call.1} parent=15 // pred_region
        %s124 = sadd.s32 %s15, %s16
        %p125 = scmp.lt.s32.totalorder %s124, 1
        %s126 = scalar_select %p125, %s124, 1
        %s127 = smul.addr %s126, 8
        %s128 = scalar_lea.vmem %s0, %s127
        %s129 = sadd.s32 %s15, %s16
      $region20: #{tpu_custom_call.1} parent=15 // pred_fallthru
        _
      // Predicated region
      $region21: #{tpu_custom_call.1} parent=15 // pred_check
        %p130 = pneg %p70
      $region22: #{tpu_custom_call.1} parent=15 // pred_check_branch
        %132 = sbr.rel (%p130) target = $region24
      $region23: #{tpu_custom_call.1} parent=15 // pred_region
        %s133 = sadd.s32 %s15, %s16
        %p134 = scmp.lt.s32.totalorder %s133, 1
        %s135 = scalar_select %p134, %s133, 1
        %s136 = smul.addr %s135, 8
        %s137 = scalar_lea.vmem %s1, %s136
        %s138 = sadd.s32 %s15, %s16
      $region24: #{tpu_custom_call.1} parent=15 // pred_fallthru
        _
    $region16: #{tpu_custom_call.1} parent=5 // pred_fallthru
      _
    %p139 = scmp.le.s32.totalorder 1, %s8
    %p140 = scmp.lt.s32.totalorder %s8, 3
    %p141 = pnand %p139, %p140
    %p142 = pneg %p141
    // Predicated region
    $region25: #{tpu_custom_call.1} parent=5 // pred_check
      _
    $region26: #{tpu_custom_call.1} parent=5 // pred_check_branch
      %144 = sbr.rel (%p141) target = $region28
    $region27: #{tpu_custom_call.1} parent=5 // pred_region
      %s145 = ssub.s32 %s8, 1
      %s146 = sadd.s32 %s17, %s18
      %p147 = scmp.lt.s32.totalorder %s146, 1
      %s148 = scalar_select %p147, %s146, 1
      %s149 = smul.addr %s148, 8
      %s150 = scalar_lea.vmem %s0, %s149
      %p151 = pneg %p48
      %p152 = pneg %p45
      %s153 = sadd.s32 %s17, %s18
      %p154 = scmp.lt.s32.totalorder %s153, 1
      %s155 = scalar_select %p154, %s153, 1
      %s156 = smul.addr %s155, 8
      %s157 = scalar_lea.vmem %s1, %s156
      %p158 = pneg %p76
      %p159 = pneg %p73
      %p160 = pneg %p102
      %p161 = pneg %p99
      %p162 = scmp.lt.s32.totalorder %s17, 1
      %s163 = scalar_select %p162, %s17, 1
      %s164 = scalar_lea.vmem %s2, %s163
      %s165 = sadd.s32 %s17, %s18
      %p166 = scmp.lt.s32.totalorder %s165, 1
      %s167 = scalar_select %p166, %s165, 1
      %s168 = smul.addr %s167, 8
      %s169 = scalar_lea.vmem %s0, %s168
      %s170 = sadd.s32 %s17, %s18
      %s171 = sadd.s32 %s17, %s18
      %p172 = scmp.lt.s32.totalorder %s171, 1
      %s173 = scalar_select %p172, %s171, 1
      %s174 = smul.addr %s173, 8
      %s175 = scalar_lea.vmem %s1, %s174
      %s176 = sadd.s32 %s17, %s18
      %p177 = scmp.lt.s32.totalorder %s17, 1
      %s178 = scalar_select %p177, %s17, 1
      %s179 = scalar_lea.vmem %s2, %s178
      %p180 = scmp.eq.s32.totalorder %s18, 0
      // Predicated region
      $region29: #{tpu_custom_call.1} parent=27 // pred_check
        %p181 = pneg %p180
      $region30: #{tpu_custom_call.1} parent=27 // pred_check_branch
        %183 = sbr.rel (%p181) target = $region32
      $region31: #{tpu_custom_call.1} parent=27 // pred_region
        %vm184 = vcmask 7168
        %185 = vst.msk [vmem:[#allocation2] sm:$0xff] %vm184, 0.0
      $region32: #{tpu_custom_call.1} parent=27 // pred_fallthru
        _
      %v186 = vld [vmem:[%s169] sm:$0xff]
      %v187 = vld [vmem:[%s175] sm:$0xff]
      %v188 = vlaneseq
      %v189 = vand.u32 %v188, 127
      %190 = vset.pattern.permute.xlu0 0
      %191 = vperm.xlu0 %190, %v187
      %v192 = vpop.permute.xlu0 %191
      %vm193 = vcmp.eq.s32.totalorder %v189, %v192
      %v194 = vsel %vm193, 1, 0
      %v195 = vcvt.s32.f32 %v194
      %v196 = vmul.f32 %v186, %v195
      %vm197 = vcmask 261120
      %v198 = vsel %vm197, %v196, 0.0
      %199 = vadd.xlane.f32.xlu0 %v198
      %v200 = vpop.xlane.xlu0 %199
      %v201 = vld [vmem:[#allocation2] sm:$0xff]
      %v202 = vsub.f32 0.0, %v200
      %v203 = vadd.f32 %v201, %v202
      %vm204 = vcmask 7168
      %205 = vst.msk [vmem:[#allocation2] sm:$0xff] %vm204, %v203
      // Predicated region
      $region33: #{tpu_custom_call.1} parent=27 // pred_check
        %p206 = pneg %p180
      $region34: #{tpu_custom_call.1} parent=27 // pred_check_branch
        %208 = sbr.rel (%p206) target = $region36
      $region35: #{tpu_custom_call.1} parent=27 // pred_region
        %v209 = vld [vmem:[#allocation2] sm:$0xff]
        %v210 = vsel %vm204, %v209, 0.0
        %v211 = vrot.slane %v210, 4
        %v212 = vadd.f32 %v210, %v211
        %v213 = vrot.slane %v212, 2
        %v214 = vadd.f32 %v212, %v213
        %v215 = vrot.slane %v214, 1
        %v216 = vadd.f32 %v214, %v215
        %vm217 = vcmask 0
        %218 = vst.msk [vmem:[%s179] sm:$0x1] %vm217, %v216
      $region36: #{tpu_custom_call.1} parent=27 // pred_fallthru
        _
      %p219 = scmp.lt.s32.totalorder %s17, 1
      %s220 = scalar_select %p219, %s17, 1
      %s221 = scalar_lea.vmem %s2, %s220
      // Predicated region
      $region37: #{tpu_custom_call.1} parent=27 // pred_check
        %p222 = pneg %p99
      $region38: #{tpu_custom_call.1} parent=27 // pred_check_branch
        %224 = sbr.rel (%p222) target = $region40
      $region39: #{tpu_custom_call.1} parent=27 // pred_region
        _
      $region40: #{tpu_custom_call.1} parent=27 // pred_fallthru
        _
    $region28: #{tpu_custom_call.1} parent=5 // pred_fallthru
      _
    %p225 = scmp.le.s32.totalorder 2, %s8
    // Predicated region
    $region41: #{tpu_custom_call.1} parent=5 // pred_check
      %p226 = pneg %p225
    $region42: #{tpu_custom_call.1} parent=5 // pred_check_branch
      %228 = sbr.rel (%p226) target = $region44
    $region43: #{tpu_custom_call.1} parent=5 // pred_region
      %s229 = ssub.s32 %s8, 2
      // Predicated region
      $region45: #{tpu_custom_call.1} parent=43 // pred_check
        %p230 = pneg %p105
      $region46: #{tpu_custom_call.1} parent=43 // pred_check_branch
        %232 = sbr.rel (%p230) target = $region48
      $region47: #{tpu_custom_call.1} parent=43 // pred_region
        %p233 = scmp.lt.s32.totalorder %s19, 1
        %s234 = scalar_select %p233, %s19, 1
        %s235 = scalar_lea.vmem %s2, %s234
      $region48: #{tpu_custom_call.1} parent=43 // pred_fallthru
        _
    $region44: #{tpu_custom_call.1} parent=5 // pred_fallthru
      _
  $region6: #{tpu_custom_call.1} parent=0 // loop_footer
    %s12 = sadd.s32 1, %s8
  $region7: #{tpu_custom_call.1} parent=0 // loop_footer_branch
    %7 = sbr.rel target = $region3
  $region8: #{tpu_custom_call.1} parent=0 // loop_exit
    _

</llo_original>
